<compile_context>
chip_gen: v7x
topology: tpu7x:2x2x1
jax: 0.10.0
libtpu: 0.0.40
codegen_flags: <defaults>
</compile_context>

<pallas_src>
import jax
import jax.numpy as jnp
from jax.experimental import pallas as pl
from jax.experimental.pallas import tpu as pltpu


# ----------------------------------------------------------------------------
# Kernel: one fused GEMM + f32 bias add, cast to the output dtype on store.
# ----------------------------------------------------------------------------
def _se2_kernel(xu_ref, w_ref, b_ref, out_ref):
    # xu:(TB,K)  w:(K,TN)  b:(1,TN) f32  out:(TB,TN)
    acc = jnp.dot(xu_ref[...], w_ref[...], preferred_element_type=jnp.float32)
    out_ref[...] = (acc + b_ref[...]).astype(out_ref.dtype)


# ----------------------------------------------------------------------------
# One-time wrapper-side weight fusion (weights are fixed at inference time).
# ----------------------------------------------------------------------------
def fuse_params(params, dim_state, dim_action, compute_dtype=jnp.float32):
    """Collapses lx/lu/lh/lo (+ output slice) into one (S+A, S*S) matrix + bias.

    compute_dtype: dtype of the matmul operands (bf16 works on v5e/v6e/v7x
    MXUs and halves weight/activation DMA bytes; accumulation stays f32).
    """
    S, A = dim_state, dim_action
    P = S * S

    wx_t = params["wx"].T          # (S, S)
    wu_t = params["wu"].T          # (A, A)
    wh_t = params["wh"].T          # (H, H), rows indexed by [featx, featu, x, u]
    wo_t = params["wo"].T          # (H, S*(S+A))

    wh_x = wh_t[0:S, :]
    wh_u = wh_t[S:S + A, :]
    wh_xp = wh_t[S + A:2 * S + A, :]
    wh_up = wh_t[2 * S + A:, :]

    # Pre-slice lo to the S*S columns that the forward actually keeps.
    wo_sl = wo_t[:, :P]
    bo_sl = params["bo"][:P]

    # All fusion math in f32 (one-time, outside the kernel).
    wx_f = (wx_t @ wh_x + wh_xp) @ wo_sl                      # (S, S*S)
    wu_f = (wu_t @ wh_u + wh_up) @ wo_sl                      # (A, S*S)
    b_f = (params["bx"] @ wh_x + params["bu"] @ wh_u
           + params["bh"]) @ wo_sl + bo_sl                    # (S*S,)

    w_f = jnp.concatenate([wx_f, wu_f], axis=0)               # (S+A, S*S)
    return dict(
        w=w_f.astype(compute_dtype),
        b=b_f.reshape(1, P).astype(jnp.float32),   # bias / epilogue stays f32
        p=P,
    )


# ----------------------------------------------------------------------------
# Pallas call wrapper.
# ----------------------------------------------------------------------------
def se2_forward(x, u, fused, *, out_dtype=jnp.float32,
                target_out_bytes=4 * 1024 * 1024):
    """feat_A = SystemEstimator2garbage forward, shape (B, dim_state**2)."""
    w, b = fused["w"], fused["b"]
    P = fused["p"]
    B, S = x.shape
    A = u.shape[1]
    K = S + A

    cdt = w.dtype
    xu = jnp.concatenate([x.astype(cdt), u.astype(cdt)], axis=1)   # (B, K)

    w_isz = jnp.dtype(cdt).itemsize
    o_isz = jnp.dtype(out_dtype).itemsize

    # ---- N (fused output dim) tiling --------------------------------------
    # Full-width block when P is small (block == full dim, so any P is legal,
    # no lane padding, no post-kernel slice). Tile at 2048 lanes when P is
    # large so weight/output tiles stay VMEM-bounded independent of S.
    TN_CAP = 2048
    TN = P if P <= TN_CAP else TN_CAP              # TN_CAP is a multiple of 128
    grid_n = pl.cdiv(P, TN)

    # ---- Batch tiling: ~target_out_bytes of output per grid step ----------
    row_bytes = TN * o_isz
    if B <= 8:
        TB = B                                      # block == full dim: legal
    else:
        TB = max(8, min(B, target_out_bytes // max(row_bytes, 1)))
        TB = (TB // 8) * 8
        # Guarantee >= 2 total grid steps so v7x's second TensorCore has work.
        if grid_n * pl.cdiv(B, TB) < 2:
            TB = max(8, ((B // 2) // 8) * 8)
    grid_b = pl.cdiv(B, TB)

    # ---- Explicit VMEM accounting (double-buffered tiles + f32 acc) --------
    vmem_est = (2 * TB * K * w_isz          # xu tiles
                + 2 * K * TN * w_isz        # W tiles
                + 2 * TN * 4                # bias tiles
                + 2 * TB * TN * o_isz       # output tiles
                + TB * TN * 4)              # f32 accumulator temp
    vmem_limit = int(min(48 * 1024 * 1024,
                         max(32 * 1024 * 1024, 2 * vmem_est)))

    out = pl.pallas_call(
        _se2_kernel,
        out_shape=jax.ShapeDtypeStruct((B, P), out_dtype),
        grid=(grid_b, grid_n),
        in_specs=[
            pl.BlockSpec((TB, K), lambda i, j: (i, 0)),    # xu  (pipelined on i)
            pl.BlockSpec((K, TN), lambda i, j: (0, j)),    # W   (constant in i)
            pl.BlockSpec((1, TN), lambda i, j: (0, j)),    # b   (constant in i)
        ],
        out_specs=pl.BlockSpec((TB, TN), lambda i, j: (i, j)),
        compiler_params=pltpu.CompilerParams(
            dimension_semantics=("parallel", "parallel"),
            vmem_limit_bytes=vmem_limit,
        ),
    )(xu, w, b)
    return out


# ----------------------------------------------------------------------------
# Init + pure-JAX reference (original un-fused chain) for correctness checks.
# ----------------------------------------------------------------------------
def init_params(key, dim_state, dim_action):
    """Deterministic init mimicking nn.Linear (uniform in +-1/sqrt(fan_in))."""
    S, A = dim_state, dim_action
    H = 2 * (S + A)
    P = S * (S + A)
    ks = jax.random.split(key, 8)

    def lin(kw, kb, fan_out, fan_in):
        bound = 1.0 / jnp.sqrt(float(fan_in))
        w = jax.random.uniform(kw, (fan_out, fan_in), jnp.float32, -bound, bound)
        b = jax.random.uniform(kb, (fan_out,), jnp.float32, -bound, bound)
        return w, b

    wx, bx = lin(ks[0], ks[1], S, S)
    wu, bu = lin(ks[2], ks[3], A, A)
    wh, bh = lin(ks[4], ks[5], H, H)
    wo, bo = lin(ks[6], ks[7], P, H)
    return dict(wx=wx, bx=bx, wu=wu, bu=bu, wh=wh, bh=bh, wo=wo, bo=bo)


def reference_forward(x, u, params, dim_state):
    featx = x @ params["wx"].T + params["bx"]
    featu = u @ params["wu"].T + params["bu"]
    feat = jnp.concatenate([featx, featu, x, u], axis=1)
    feat = feat @ params["wh"].T + params["bh"]
    feat = feat @ params["wo"].T + params["bo"]
    return feat[..., : dim_state ** 2]


# ----------------------------------------------------------------------------
# Demo / self-test.
# ----------------------------------------------------------------------------
if __name__ == "__main__":
    dim_state = 4
    dim_action = 3

    key = jax.random.PRNGKey(0)
    kx, ku, kp = jax.random.split(key, 3)
    params = init_params(kp, dim_state, dim_action)

    fused_f32 = fuse_params(params, dim_state, dim_action,
                            compute_dtype=jnp.float32)
    fused_bf16 = fuse_params(params, dim_state, dim_action,
                             compute_dtype=jnp.bfloat16)

    # --- Small batch, f32 operands + f32 output (tight check) ---------------
    batch = 2
    x = jax.random.normal(kx, (batch, dim_state), jnp.float32)
    u = jax.random.normal(ku, (batch, dim_action), jnp.float32)
    ref = reference_forward(x, u, params, dim_state)
    out = jax.block_until_ready(se2_forward(x, u, fused_f32))
    assert out.shape == (batch, dim_state ** 2)
    assert jnp.allclose(out, ref, atol=1e-4, rtol=1e-4)

    # --- Ragged, multi-step batch grid (B not a multiple of TB), f32 --------
    batch2 = 37
    x2 = jax.random.normal(kx, (batch2, dim_state), jnp.float32)
    u2 = jax.random.normal(ku, (batch2, dim_action), jnp.float32)
    ref2 = reference_forward(x2, u2, params, dim_state)
    out2 = jax.block_until_ready(se2_forward(x2, u2, fused_f32))
    assert out2.shape == (batch2, dim_state ** 2)
    assert jnp.allclose(out2, ref2, atol=1e-4, rtol=1e-4)

    # --- bf16 operands + bf16 output (halves HBM read and write traffic) ----
    out3 = jax.block_until_ready(
        se2_forward(x2, u2, fused_bf16, out_dtype=jnp.bfloat16))
    assert out3.shape == (batch2, dim_state ** 2)
    assert jnp.allclose(out3.astype(jnp.float32), ref2, atol=1e-1, rtol=1e-1)

    print("KERNEL_OK")
</pallas_src>

<mosaic_0001>
module attributes {stable_mosaic.version = 11 : i64} {
  func.func @_se2_kernel(%arg0: i32, %arg1: i32, %arg2: memref<2x7xf32, #tpu.memory_space<vmem>>, %arg3: memref<7x16xf32, #tpu.memory_space<vmem>>, %arg4: memref<1x16xf32, #tpu.memory_space<vmem>>, %arg5: memref<2x16xf32, #tpu.memory_space<vmem>>) attributes {dimension_semantics = [#tpu.dimension_semantics<parallel>, #tpu.dimension_semantics<parallel>], iteration_bounds = array<i64: 1, 1>, scalar_prefetch = 0 : i64, scratch_operands = 0 : i64, tpu.core_type = #tpu.core_type<tc>, window_params = [{transform_indices = @transform_0, window_bounds = array<i64: 2, 7>}, {transform_indices = @transform_1, window_bounds = array<i64: 7, 16>}, {transform_indices = @transform_2, window_bounds = array<i64: 1, 16>}, {transform_indices = @transform_3, window_bounds = array<i64: 2, 16>}]} {
    %c0 = arith.constant 0 : index
    %c0_0 = arith.constant 0 : index
    %0 = vector.load %arg2[%c0, %c0_0] : memref<2x7xf32, #tpu.memory_space<vmem>>, vector<2x7xf32>
    %c0_1 = arith.constant 0 : index
    %c0_2 = arith.constant 0 : index
    %1 = vector.load %arg3[%c0_1, %c0_2] : memref<7x16xf32, #tpu.memory_space<vmem>>, vector<7x16xf32>
    %cst = arith.constant dense<0.000000e+00> : vector<2x16xf32>
    %2 = tpu.matmul %0, %1, %cst {dimension_numbers = #tpu.dot_dimension_numbers<[1], [0], [0], [1], [0, 0, 1, 1], [], []>} : vector<2x7xf32>, vector<7x16xf32>, vector<2x16xf32> -> vector<2x16xf32>
    %c0_3 = arith.constant 0 : index
    %c0_4 = arith.constant 0 : index
    %3 = vector.load %arg4[%c0_3, %c0_4] : memref<1x16xf32, #tpu.memory_space<vmem>>, vector<1x16xf32>
    %4 = vector.broadcast %3 : vector<1x16xf32> to vector<2x16xf32>
    %5 = arith.addf %2, %4 : vector<2x16xf32>
    %c0_5 = arith.constant 0 : index
    %c0_6 = arith.constant 0 : index
    %6 = vector.load %arg5[%c0_5, %c0_6] : memref<2x16xf32, #tpu.memory_space<vmem>>, vector<2x16xf32>
    tpu.vector_store %arg5[%c0_5, %c0_6], %5 {strides = array<i32>} : memref<2x16xf32, #tpu.memory_space<vmem>>, vector<2x16xf32>,
    return
  }
  func.func @transform_0(%arg0: i32, %arg1: i32) -> (i32, i32) {
    %c0_i32 = arith.constant 0 : i32
    %c0_i32_0 = arith.constant 0 : i32
    return %arg0, %c0_i32 : i32, i32
  }
  func.func @transform_1(%arg0: i32, %arg1: i32) -> (i32, i32) {
    %c0_i32 = arith.constant 0 : i32
    %c0_i32_0 = arith.constant 0 : i32
    return %c0_i32, %arg1 : i32, i32
  }
  func.func @transform_2(%arg0: i32, %arg1: i32) -> (i32, i32) {
    %c0_i32 = arith.constant 0 : i32
    %c0_i32_0 = arith.constant 0 : i32
    return %c0_i32, %arg1 : i32, i32
  }
  func.func @transform_3(%arg0: i32, %arg1: i32) -> (i32, i32) {
    %c0_i32 = arith.constant 0 : i32
    return %arg0, %arg1 : i32, i32
  }
}

</mosaic_0001>

<llo_original>
// kernel: tpu_custom_call.1
$region0: #{tpu_custom_call.1}
  #allocation0 [shape = 'u32[]', space=smem, size = 0x4, offset = 0x4, fixed_abs, tag = 'smem constant byte address 0x4 - core index']
  #allocation1 [shape = 'u32[144,128]{1,0:T(1,128)}', space=vmem, size = 0x12000, scoped, tag = 'internal scratch']
  %s0 = inlined_call_operand.hbm [shape: f32[2,7], index: 0, kind: input, shape index: {}]
  %s1 = inlined_call_operand.hbm [shape: f32[7,16], index: 1, kind: input, shape index: {}]
  %s2 = inlined_call_operand.vmem [shape: f32[1,16], index: 2, kind: input, shape index: {}]
  %s3 = inlined_call_operand.hbm [shape: f32[2,16], index: 3, kind: output, shape index: {}]
  %s4 = sld [smem:[#allocation0]]
  $region30: #{tpu_custom_call.1} parent=0
    _
  %s6 = ssub.s32 1, %s4
  %s7 = scalar_select 0, %s6, %s4
  $region1: #{tpu_custom_call.1} parent=0
    #allocation2 [shape = 'u8[1024]{0}', space=vmem, size = 0x400, scoped, tag = 'input window, operand 0, single buffered']
    #allocation3 [shape = 's32[1]{0}', space=sflag, size = 0x4, scoped, tag = 'scoped memory for tpu_custom_call.1']
    #allocation4 [shape = 's32[1]{0}', space=sflag, size = 0x4, scoped, tag = 'scoped memory for tpu_custom_call.1']
    #allocation5 [shape = 'u8[4096]{0}', space=vmem, size = 0x1000, scoped, tag = 'input window, operand 1, single buffered']
    #allocation6 [shape = 's32[1]{0}', space=sflag, size = 0x4, scoped, tag = 'scoped memory for tpu_custom_call.1']
    #allocation7 [shape = 'u8[1024]{0}', space=vmem, size = 0x400, scoped, tag = 'output window, operand 0, single buffered']
    %8 = vsyncpa [#allocation3], 0
    %9 = vsyncpa [#allocation6], 0
    %10 = vsyncpa [#allocation4], 0
    // Predicated region
    $region2: #{tpu_custom_call.1} parent=1 // pred_check
      _
    $region3: #{tpu_custom_call.1} parent=1 // pred_check_branch
      %12 = sbr.rel (0) target = $region5
    $region4: #{tpu_custom_call.1} parent=1 // pred_region
      %s14 = ssub.s32 32, 32
      %15 = vsyncadd [#allocation3], %s14
      %s17 = sshll.u32 [#allocation2], 4
      %s18 = int_to_ptr.vmem [resolvable:$true] %s17
      %20 = dma.hbm_to_vmem [thread:$0]  %s0, 32, %s18, [#allocation3]
    $region5: #{tpu_custom_call.1} parent=1 // pred_fallthru
      _
    // Predicated region
    $region6: #{tpu_custom_call.1} parent=1 // pred_check
      _
    $region7: #{tpu_custom_call.1} parent=1 // pred_check_branch
      %22 = sbr.rel (0) target = $region9
    $region8: #{tpu_custom_call.1} parent=1 // pred_region
      %s24 = ssub.s32 128, 128
      %25 = vsyncadd [#allocation6], %s24
      %s27 = sshll.u32 [#allocation5], 4
      %s28 = int_to_ptr.vmem [resolvable:$true] %s27
      %30 = dma.hbm_to_vmem [thread:$0]  %s1, 128, %s28, [#allocation6]
    $region9: #{tpu_custom_call.1} parent=1 // pred_fallthru
      _
    // Predicated region
    $region10: #{tpu_custom_call.1} parent=1 // pred_check
      _
    $region11: #{tpu_custom_call.1} parent=1 // pred_check_branch
      %32 = sbr.rel (0) target = $region13
    $region12: #{tpu_custom_call.1} parent=1 // pred_region
      _
    $region13: #{tpu_custom_call.1} parent=1 // pred_fallthru
      _
    // Predicated region
    $region14: #{tpu_custom_call.1} parent=1 // pred_check
      _
    $region15: #{tpu_custom_call.1} parent=1 // pred_check_branch
      %34 = sbr.rel (0) target = $region17
    $region16: #{tpu_custom_call.1} parent=1 // pred_region
      %35 = dma.done [#allocation3], 32
    $region17: #{tpu_custom_call.1} parent=1 // pred_fallthru
      _
    // Predicated region
    $region18: #{tpu_custom_call.1} parent=1 // pred_check
      _
    $region19: #{tpu_custom_call.1} parent=1 // pred_check_branch
      %37 = sbr.rel (0) target = $region21
    $region20: #{tpu_custom_call.1} parent=1 // pred_region
      %38 = dma.done [#allocation6], 128
    $region21: #{tpu_custom_call.1} parent=1 // pred_fallthru
      _
    %v39 = vld [vmem:[#allocation2] sm:$0x3]
    %v40 = vld [vmem:[#allocation5] sm:$0x7f]
    %v41 = vld [vmem:[%s2] sm:$0x1]
    %v43 = vlaneseq
    %v44 = vshrl.u32 %v43, 7
    %v45 = vsub.s32 0, %v44
    %v46 = vrot.slane %v41, %v45
    %vm48 = vcmask 56320
    %v50 = vsel %vm48, %v39, 0
    %vm52 = vcmask 1046528
    %v54 = vsel %vm52, %v40, 0
    %56 = vmatprep.subr.mxu0 0.0
    %57 = vmatpush1.msra.mxu0 %v54
    %58 = vmatprep.subr.mxu0 0.0
    %59 = vmatpush1.msra.mxu0 0.0
    %60 = vmatprep.subr.mxu0 0.0
    %61 = vmatpush1.msra.mxu0 0.0
    %62 = vmatprep.subr.mxu0 0.0
    %63 = vmatpush1.msra.mxu0 0.0
    %64 = vmatprep.subr.mxu0 0.0
    %65 = vmatpush1.msra.mxu0 0.0
    %66 = vmatprep.subr.mxu0 0.0
    %67 = vmatpush1.msra.mxu0 0.0
    %68 = vmatprep.subr.mxu0 0.0
    %69 = vmatpush1.msra.mxu0 0.0
    %70 = vmatprep.subr.mxu0 0.0
    %71 = vmatpush1.msra.mxu0 0.0
    %72 = vmatprep.subr.mxu0 0.0
    %73 = vmatpush1.msra.mxu0 0.0
    %74 = vmatprep.subr.mxu0 0.0
    %75 = vmatpush1.msra.mxu0 0.0
    %76 = vmatprep.subr.mxu0 0.0
    %77 = vmatpush1.msra.mxu0 0.0
    %78 = vmatprep.subr.mxu0 0.0
    %79 = vmatpush1.msra.mxu0 0.0
    %80 = vmatprep.subr.mxu0 0.0
    %81 = vmatpush1.msra.mxu0 0.0
    %82 = vmatprep.subr.mxu0 0.0
    %83 = vmatpush1.msra.mxu0 0.0
    %84 = vmatprep.subr.mxu0 0.0
    %85 = vmatpush1.msra.mxu0 0.0
    %86 = vmatprep.subr.mxu0 0.0
    %87 = vmatpush1.msra.mxu0 0.0
    %88 = vmatprep.subr.mxu0 0.0
    %89 = vmatpush1.msra.mxu0 0.0
    %90 = vmatprep.subr.mxu0 0.0
    %91 = vmatpush1.msra.mxu0 0.0
    %92 = vmatprep.subr.mxu0 0.0
    %93 = vmatpush1.msra.mxu0 0.0
    %94 = vmatprep.subr.mxu0 0.0
    %95 = vmatpush1.msra.mxu0 0.0
    %96 = vmatprep.subr.mxu0 0.0
    %97 = vmatpush1.msra.mxu0 0.0
    %98 = vmatprep.subr.mxu0 0.0
    %99 = vmatpush1.msra.mxu0 0.0
    %100 = vmatprep.subr.mxu0 0.0
    %101 = vmatpush1.msra.mxu0 0.0
    %102 = vmatprep.subr.mxu0 0.0
    %103 = vmatpush1.msra.mxu0 0.0
    %104 = vmatprep.subr.mxu0 0.0
    %105 = vmatpush1.msra.mxu0 0.0
    %106 = vmatprep.subr.mxu0 0.0
    %107 = vmatpush1.msra.mxu0 0.0
    %108 = vmatprep.subr.mxu0 0.0
    %109 = vmatpush1.msra.mxu0 0.0
    %110 = vmatprep.subr.mxu0 0.0
    %111 = vmatpush1.msra.mxu0 0.0
    %112 = vmatprep.subr.mxu0 0.0
    %113 = vmatpush1.msra.mxu0 0.0
    %114 = vmatprep.subr.mxu0 0.0
    %115 = vmatpush1.msra.mxu0 0.0
    %116 = vmatprep.subr.mxu0 0.0
    %117 = vmatpush1.msra.mxu0 0.0
    %118 = vmatprep.subr.mxu0 0.0
    %119 = vmatpush1.msra.mxu0 0.0
    %120 = vmatprep.mubr.f32.mxu0 0.0
    %121 = vmatmul.mubr.f32.gmra.mrb[0].mxu0 %v50
    %v122 = vpop.f32.mrb[0].mxu0
    %v123 = vadd.f32 %v46, %v122
    %v124 = vpop.f32.mrb[0].mxu0
    %125 = vdwg.mxu0
    %vm126 = vcmask 123904
    %127 = vst.msk [vmem:[#allocation7] sm:$0x3] %vm126, %v123
    // Predicated region
    $region22: #{tpu_custom_call.1} parent=1 // pred_check
      _
    $region23: #{tpu_custom_call.1} parent=1 // pred_check_branch
      %129 = sbr.rel (0) target = $region25
    $region24: #{tpu_custom_call.1} parent=1 // pred_region
      %s131 = ssub.s32 32, 32
      %132 = vsyncadd [#allocation4], %s131
      %s134 = sshll.u32 [#allocation7], 4
      %s135 = int_to_ptr.vmem [resolvable:$true] %s134
      %137 = dma.vmem_to_hbm [thread:$0]  %s135, 32, %s3, [#allocation4]
    $region25: #{tpu_custom_call.1} parent=1 // pred_fallthru
      _
    // Predicated region
    $region26: #{tpu_custom_call.1} parent=1 // pred_check
      _
    $region27: #{tpu_custom_call.1} parent=1 // pred_check_branch
      %139 = sbr.rel (0) target = $region29
    $region28: #{tpu_custom_call.1} parent=1 // pred_region
      %140 = dma.done [#allocation4], 32
    $region29: #{tpu_custom_call.1} parent=1 // pred_fallthru
      _
    %141 = vsyncpa [#allocation3], 1
    %142 = vsyncpa [#allocation6], 1
    %143 = vsyncpa [#allocation4], 1

</llo_original>
